<compile_context>
chip_gen: v5e
topology: v5e:2x2
jax: 0.10.0
libtpu: 0.0.40
codegen_flags: <defaults>
</compile_context>

<pallas_src>
import functools

import jax
import jax.numpy as jnp
from jax.experimental import pallas as pl
from jax.experimental.pallas import tpu as pltpu


def _round_up(x: int, m: int) -> int:
    return (x + m - 1) // m * m


def _vmem_limit_bytes():
    """Generation-aware VMEM cap: ~85% of physical per-core VMEM
    (~54 MiB on v7x; capped at 100 MiB on v5e/v6e).  None if unknown."""
    try:
        cap = getattr(pltpu.get_tpu_info(), "vmem_capacity_bytes", None)
    except Exception:
        cap = None
    if not cap:
        return None
    return min(int(cap * 0.85), 100 * 1024 * 1024)


def pack_params(w, b):
    """One-time relayout of the PyTorch Conv1d parameters (load-time, not per call).

    w: (2C, C, K) torch layout -> (K, C, 2C) bf16, per-tap contraction matrices.
    b: (2C,)                   -> (1, 2C) f32.
    """
    c2, c, _ = w.shape
    assert c2 == 2 * c
    w_packed = jnp.transpose(w, (2, 1, 0)).astype(jnp.bfloat16)
    b_packed = b.reshape(1, c2).astype(jnp.float32)
    return w_packed, b_packed


def adapter_kernel(x_ref, w_ref, b_ref, o_ref, *, K, S):
    """One (batch, time-tile) grid step.

    x_ref : (L, C)      f32   zero-haloed input sample, time-major (resident
                              across all time tiles of this batch element)
    w_ref : (K, C, 2C)  bf16  conv weight per tap: w_ref[k, c, o] = w_torch[o, c, k]
    b_ref : (1, 2C)     f32   conv bias
    o_ref : (TT, C)     f32   GLU output tile, time-major
    """
    TT, C = o_ref.shape
    t = pl.program_id(1)
    # First haloed-input row used by this tile; exact multiple of S*TT.
    base = pl.multiple_of(t * (S * TT), S * TT)

    # Conv1d as K accumulating MXU matmuls (bf16 operands, f32 accumulation).
    # Output position j of tap k reads haloed-input row base + S*j + k.
    acc = None
    for k in range(K):
        xk = x_ref[pl.ds(base + k, TT, stride=S), :].astype(w_ref.dtype)   # (TT, C)
        pk = jnp.dot(xk, w_ref[k], preferred_element_type=jnp.float32)     # (TT, 2C)
        acc = pk if acc is None else acc + pk
    acc = acc + b_ref[...]                                                  # (TT, 2C)

    # GLU over channels: first half gated by sigmoid(second half).  The divide
    # goes to the EUP reciprocal slot (separate VLIW slot).
    a = acc[:, :C]
    g = acc[:, C:]
    o_ref[...] = (a * pl.reciprocal(1.0 + jnp.exp(-g), approx=True)).astype(o_ref.dtype)


@functools.partial(jax.jit, static_argnames=("stride", "padding", "time_tile"))
def adapter_layer(x, w_packed, b_packed, *, stride, padding=1, time_tile=256):
    """x: (B, C, T) NCW (PyTorch layout). Returns (B, C, T_out) like the module."""
    B, C, T = x.shape
    K, Cw, C2 = w_packed.shape
    assert Cw == C and C2 == 2 * C
    S, P = stride, padding

    T_out = (T + 2 * P - K) // S + 1
    TT = _round_up(min(time_tile, _round_up(T_out, 8)), 8)   # output rows per tile
    NT = pl.cdiv(T_out, TT)
    T_out_pad = NT * TT

    # Haloed, time-major input length: every strided tap read of every tile
    # (including the padded tail tile) stays in bounds.
    L = _round_up(max(S * (T_out_pad - 1) + K, T + P), 8)

    # Single fused relayout pass over x: NCW -> NWC plus the conv halo
    # (P zero rows on the left, L - P - T zero rows on the right).
    xp = jnp.pad(jnp.transpose(x, (0, 2, 1)), ((0, 0), (P, L - P - T), (0, 0)))

    kernel = functools.partial(adapter_kernel, K=K, S=S)

    cp = dict(dimension_semantics=("parallel", "parallel"))
    vmem_limit = _vmem_limit_bytes()
    if vmem_limit is not None:
        cp["vmem_limit_bytes"] = vmem_limit

    out_ntc = pl.pallas_call(
        kernel,
        out_shape=jax.ShapeDtypeStruct((B, T_out_pad, C), x.dtype),
        grid=(B, NT),
        in_specs=[
            # Whole haloed sample, resident across this sample's time tiles.
            pl.BlockSpec((None, L, C), lambda bb, tt: (bb, 0, 0)),
            # Grid-invariant weight / bias: single-buffered (no wasted VMEM).
            pl.BlockSpec((K, C, C2), lambda bb, tt: (0, 0, 0),
                         pipeline_mode=pl.Buffered(1)),
            pl.BlockSpec((1, C2), lambda bb, tt: (0, 0),
                         pipeline_mode=pl.Buffered(1)),
        ],
        out_specs=pl.BlockSpec((None, TT, C), lambda bb, tt: (bb, tt, 0)),
        compiler_params=pltpu.CompilerParams(**cp),
    )(xp, w_packed, b_packed)

    # Trim the padded tail (a no-op when T_out % TT == 0) and return PyTorch's
    # NCW layout via one fusable transpose outside the kernel.
    return jnp.transpose(out_ntc[:, :T_out, :], (0, 2, 1))


if __name__ == "__main__":
    # Small config consistent with the module: output_hidden_size = 8,
    # adapter_kernel_size = 3, adapter_stride = 2 (wav2vec2 defaults), padding=1.
    B, C, K, S, T = 2, 8, 3, 2, 16
    C2 = 2 * C

    key = jax.random.PRNGKey(0)
    k1, k2, k3 = jax.random.split(key, 3)
    x = jax.random.normal(k1, (B, C, T), jnp.float32)
    bound = 1.0 / (C * K) ** 0.5                       # PyTorch Conv1d default init scale
    w = jax.random.uniform(k2, (C2, C, K), jnp.float32, -bound, bound)
    b = jax.random.uniform(k3, (C2,), jnp.float32, -bound, bound)

    # One-time parameter relayout (hoisted out of the per-call path).
    w_packed, b_packed = pack_params(w, b)

    out = jax.block_until_ready(
        adapter_layer(x, w_packed, b_packed, stride=S, padding=1))

    # Pure-JAX f32 reference (PyTorch semantics: Conv1d + bias, then GLU(dim=1)).
    conv = jax.lax.conv_general_dilated(
        x, w, window_strides=(S,), padding=[(1, 1)],
        dimension_numbers=("NCH", "OIH", "NCH"),
        precision=jax.lax.Precision.HIGHEST,
    ) + b[None, :, None]
    ref = conv[:, :C, :] * jax.nn.sigmoid(conv[:, C:, :])

    T_out = (T + 2 - K) // S + 1
    assert out.shape == (B, C, T_out) and out.dtype == jnp.float32
    # bf16 MXU operands + approx reciprocal vs. the f32 reference -> relaxed tol.
    assert jnp.allclose(out, ref, atol=5e-2, rtol=5e-2), float(jnp.max(jnp.abs(out - ref)))
    print("KERNEL_OK")
</pallas_src>

<mosaic_0001>
module attributes {stable_mosaic.version = 11 : i64} {
  func.func @adapter_kernel(%arg0: i32, %arg1: i32, %arg2: memref<1x24x8xf32, #tpu.memory_space<vmem>>, %arg3: memref<3x8x16xbf16, #tpu.memory_space<vmem>>, %arg4: memref<1x16xf32, #tpu.memory_space<vmem>>, %arg5: memref<1x8x8xf32, #tpu.memory_space<vmem>>) attributes {dimension_semantics = [#tpu.dimension_semantics<parallel>, #tpu.dimension_semantics<parallel>], iteration_bounds = array<i64: 2, 1>, scalar_prefetch = 0 : i64, scratch_operands = 0 : i64, tpu.core_type = #tpu.core_type<tc>, window_params = [{transform_indices = @transform_0, window_bounds = array<i64: 1, 24, 8>}, {pipeline_mode = #tpu.pipeline_mode<synchronous>, transform_indices = @transform_1, window_bounds = array<i64: 3, 8, 16>}, {pipeline_mode = #tpu.pipeline_mode<synchronous>, transform_indices = @transform_2, window_bounds = array<i64: 1, 16>}, {transform_indices = @transform_3, window_bounds = array<i64: 1, 8, 8>}]} {
    %c16_i32 = arith.constant 16 : i32
    %0 = arith.muli %arg1, %c16_i32 : i32
    %1 = tpu.assume_multiple %0, 16 : i32
    %c0_i32 = arith.constant 0 : i32
    %2 = arith.addi %1, %c0_i32 : i32
    %c0 = arith.constant 0 : index
    %3 = arith.index_cast %2 : i32 to index
    %c0_0 = arith.constant 0 : index
    %4 = tpu.strided_load %arg2[%c0, %3, %c0_0] {strides = array<i32: 1, 2, 1>} : memref<1x24x8xf32, #tpu.memory_space<vmem>>, vector<1x8x8xf32>
    %5 = vector.shape_cast %4 : vector<1x8x8xf32> to vector<8x8xf32>
    %6 = arith.truncf %5 : vector<8x8xf32> to vector<8x8xbf16>
    %c0_1 = arith.constant 0 : index
    %c0_2 = arith.constant 0 : index
    %c0_3 = arith.constant 0 : index
    %7 = vector.load %arg3[%c0_1, %c0_2, %c0_3] : memref<3x8x16xbf16, #tpu.memory_space<vmem>>, vector<1x8x16xbf16>
    %8 = vector.shape_cast %7 : vector<1x8x16xbf16> to vector<8x16xbf16>
    %cst = arith.constant dense<0.000000e+00> : vector<8x16xf32>
    %9 = tpu.matmul %6, %8, %cst {dimension_numbers = #tpu.dot_dimension_numbers<[1], [0], [0], [1], [0, 0, 1, 1], [], []>} : vector<8x8xbf16>, vector<8x16xbf16>, vector<8x16xf32> -> vector<8x16xf32>
    %c1_i32 = arith.constant 1 : i32
    %10 = arith.addi %1, %c1_i32 : i32
    %c0_4 = arith.constant 0 : index
    %11 = arith.index_cast %10 : i32 to index
    %c0_5 = arith.constant 0 : index
    %12 = tpu.strided_load %arg2[%c0_4, %11, %c0_5] {strides = array<i32: 1, 2, 1>} : memref<1x24x8xf32, #tpu.memory_space<vmem>>, vector<1x8x8xf32>
    %13 = vector.shape_cast %12 : vector<1x8x8xf32> to vector<8x8xf32>
    %14 = arith.truncf %13 : vector<8x8xf32> to vector<8x8xbf16>
    %c1 = arith.constant 1 : index
    %c0_6 = arith.constant 0 : index
    %c0_7 = arith.constant 0 : index
    %15 = vector.load %arg3[%c1, %c0_6, %c0_7] : memref<3x8x16xbf16, #tpu.memory_space<vmem>>, vector<1x8x16xbf16>
    %16 = vector.shape_cast %15 : vector<1x8x16xbf16> to vector<8x16xbf16>
    %cst_8 = arith.constant dense<0.000000e+00> : vector<8x16xf32>
    %17 = tpu.matmul %14, %16, %cst_8 {dimension_numbers = #tpu.dot_dimension_numbers<[1], [0], [0], [1], [0, 0, 1, 1], [], []>} : vector<8x8xbf16>, vector<8x16xbf16>, vector<8x16xf32> -> vector<8x16xf32>
    %18 = arith.addf %9, %17 : vector<8x16xf32>
    %c2_i32 = arith.constant 2 : i32
    %19 = arith.addi %1, %c2_i32 : i32
    %c0_9 = arith.constant 0 : index
    %20 = arith.index_cast %19 : i32 to index
    %c0_10 = arith.constant 0 : index
    %21 = tpu.strided_load %arg2[%c0_9, %20, %c0_10] {strides = array<i32: 1, 2, 1>} : memref<1x24x8xf32, #tpu.memory_space<vmem>>, vector<1x8x8xf32>
    %22 = vector.shape_cast %21 : vector<1x8x8xf32> to vector<8x8xf32>
    %23 = arith.truncf %22 : vector<8x8xf32> to vector<8x8xbf16>
    %c2 = arith.constant 2 : index
    %c0_11 = arith.constant 0 : index
    %c0_12 = arith.constant 0 : index
    %24 = vector.load %arg3[%c2, %c0_11, %c0_12] : memref<3x8x16xbf16, #tpu.memory_space<vmem>>, vector<1x8x16xbf16>
    %25 = vector.shape_cast %24 : vector<1x8x16xbf16> to vector<8x16xbf16>
    %cst_13 = arith.constant dense<0.000000e+00> : vector<8x16xf32>
    %26 = tpu.matmul %23, %25, %cst_13 {dimension_numbers = #tpu.dot_dimension_numbers<[1], [0], [0], [1], [0, 0, 1, 1], [], []>} : vector<8x8xbf16>, vector<8x16xbf16>, vector<8x16xf32> -> vector<8x16xf32>
    %27 = arith.addf %18, %26 : vector<8x16xf32>
    %c0_14 = arith.constant 0 : index
    %c0_15 = arith.constant 0 : index
    %28 = vector.load %arg4[%c0_14, %c0_15] : memref<1x16xf32, #tpu.memory_space<vmem>>, vector<1x16xf32>
    %29 = vector.broadcast %28 : vector<1x16xf32> to vector<8x16xf32>
    %30 = arith.addf %27, %29 : vector<8x16xf32>
    %31 = vector.extract_strided_slice %30 {offsets = [0, 0], sizes = [8, 8], strides = [1, 1]} : vector<8x16xf32> to vector<8x8xf32>
    %32 = vector.extract_strided_slice %30 {offsets = [0, 8], sizes = [8, 8], strides = [1, 1]} : vector<8x16xf32> to vector<8x8xf32>
    %cst_16 = arith.constant 0.000000e+00 : f32
    %33 = vector.broadcast %cst_16 : f32 to vector<8x8xf32>
    %34 = arith.subf %33, %32 : vector<8x8xf32>
    %35 = math.exp %34 : vector<8x8xf32>
    %cst_17 = arith.constant 1.000000e+00 : f32
    %36 = vector.broadcast %cst_17 : f32 to vector<8x8xf32>
    %37 = arith.addf %36, %35 : vector<8x8xf32>
    %38 = tpu.reciprocal %37 {approx = true} : vector<8x8xf32> -> vector<8x8xf32>
    %39 = arith.mulf %31, %38 : vector<8x8xf32>
    %c0_18 = arith.constant 0 : index
    %c0_19 = arith.constant 0 : index
    %c0_20 = arith.constant 0 : index
    %40 = vector.load %arg5[%c0_18, %c0_19, %c0_20] : memref<1x8x8xf32, #tpu.memory_space<vmem>>, vector<1x8x8xf32>
    %41 = vector.shape_cast %40 : vector<1x8x8xf32> to vector<8x8xf32>
    %42 = vector.shape_cast %39 : vector<8x8xf32> to vector<1x8x8xf32>
    tpu.vector_store %arg5[%c0_18, %c0_19, %c0_20], %42 {strides = array<i32>} : memref<1x8x8xf32, #tpu.memory_space<vmem>>, vector<1x8x8xf32>,
    return
  }
  func.func @transform_0(%arg0: i32, %arg1: i32) -> (i32, i32, i32) {
    %c0_i32 = arith.constant 0 : i32
    %c0_i32_0 = arith.constant 0 : i32
    %c0_i32_1 = arith.constant 0 : i32
    return %arg0, %c0_i32, %c0_i32_0 : i32, i32, i32
  }
  func.func @transform_1(%arg0: i32, %arg1: i32) -> (i32, i32, i32) {
    %c0_i32 = arith.constant 0 : i32
    %c0_i32_0 = arith.constant 0 : i32
    %c0_i32_1 = arith.constant 0 : i32
    %c0_i32_2 = arith.constant 0 : i32
    return %c0_i32, %c0_i32_0, %c0_i32_1 : i32, i32, i32
  }
  func.func @transform_2(%arg0: i32, %arg1: i32) -> (i32, i32) {
    %c0_i32 = arith.constant 0 : i32
    %c0_i32_0 = arith.constant 0 : i32
    %c0_i32_1 = arith.constant 0 : i32
    return %c0_i32, %c0_i32_0 : i32, i32
  }
  func.func @transform_3(%arg0: i32, %arg1: i32) -> (i32, i32, i32) {
    %c0_i32 = arith.constant 0 : i32
    %c0_i32_0 = arith.constant 0 : i32
    return %arg0, %arg1, %c0_i32 : i32, i32, i32
  }
}

</mosaic_0001>

<llo_original>
// kernel: adapter_layer.1
$region0: #{adapter_layer.1}
  #allocation0 [shape = 'u32[]', space=smem, size = 0x4, offset = 0x4, fixed_abs, tag = 'smem constant byte address 0x4 - core index']
  #allocation1 [shape = 'u32[72,128]{1,0:T(1,128)}', space=vmem, size = 0x9000, scoped, tag = 'internal scratch']
  %s0 = inlined_call_operand.vmem [shape: f32[2,24,8], index: 0, kind: input, shape index: {}]
  %s1 = inlined_call_operand.vmem [shape: bf16[3,8,16], index: 1, kind: input, shape index: {}]
  %s2 = inlined_call_operand.vmem [shape: f32[1,16], index: 2, kind: input, shape index: {}]
  %s3 = inlined_call_operand.vmem [shape: f32[2,8,8], index: 3, kind: output, shape index: {}]
  %s4 = sld [smem:[#allocation0]]
  $region45: #{adapter_layer.1} parent=0
    _
  %s6 = ssub.s32 1, %s4
  %s7 = scalar_select 0, %s6, %s4
  loop: start=0, step=1, limit=4
  $region2: #{adapter_layer.1} parent=0 // loop_pre_header
    _
  $region3: #{adapter_layer.1} parent=0 // loop_header
    %s9 = sphi 0, %s13
    %p10 = scmp.ge.s32.totalorder %s9, 4
    %s16 = sphi 0, %s28
    %s17 = sphi 0, %s24
    %s18 = sphi 0, %s16
    %s19 = sphi 0, %s17
    %s20 = sphi 0, %s18
    %s21 = sphi 0, %s19
    %s31 = sphi 0, %s33
    %s34 = sphi 0, %s31
    %s35 = sphi 0, %s34
    %s51 = sphi 0, %s35
    %s55 = sphi 0, %s55
    %s57 = sphi 0, %s55
    %s58 = sphi 0, %s57
    %s72 = sphi 0, %s58
    %s76 = sphi 0, %s76
    %s78 = sphi 0, %s76
    %s79 = sphi 0, %s78
    %s93 = sphi 0, %s79
    %s101 = sphi 0, %s103
    %s104 = sphi 0, %s101
    %s105 = sphi 0, %s104
    %s121 = sphi 0, %s105
  $region4: #{adapter_layer.1} parent=0 // loop_header_branch
    %12 = sbr.rel (%p10) target = $region8
  $region5: #{adapter_layer.1} parent=0 // loop_body
    %s14 = ssub.s32 %s9, 1
    %s15 = ssub.s32 %s9, 2
    %s22 = sadd.s32 1, %s17
    %p23 = scmp.ge.s32.totalorder %s22, 1
    %s24 = scalar_select %p23, 0, %s22
    %s25 = sadd.s32 1, %s16
    %s26 = scalar_select %p23, %s25, %s16
    %p27 = scmp.ge.s32.totalorder %s26, 2
    %s28 = scalar_select %p27, 0, %s26
    %s29 = ssub.s32 %s16, %s28
    %p30 = scmp.eq.s32.totalorder %s29, 0
    %s32 = sadd.s32 %s31, 1
    %s33 = scalar_select %p30, %s31, %s32
    %p36 = pneg %p30
    %p37 = scmp.eq.s32.totalorder %s9, 1
    %p38 = por %p36, %p37
    %p39 = scmp.ne.s32.totalorder %s31, %s34
    %p40 = scmp.eq.s32.totalorder %s9, 0
    %p41 = por %p39, %p40
    %p42 = scmp.ne.s32.totalorder %s31, %s34
    %p43 = scmp.eq.s32.totalorder %s14, 1
    %p44 = por %p42, %p43
    %p45 = scmp.ne.s32.totalorder %s34, %s35
    %p46 = scmp.eq.s32.totalorder %s14, 0
    %p47 = por %p45, %p46
    %p48 = scmp.ne.s32.totalorder %s34, %s35
    %p49 = scmp.eq.s32.totalorder %s15, 1
    %p50 = por %p48, %p49
    %p52 = scmp.ne.s32.totalorder %s35, %s51
    %p53 = scmp.eq.s32.totalorder %s15, 0
    %p54 = por %p52, %p53
    %s56 = sadd.s32 %s55, 1
    %p59 = scmp.eq.s32.totalorder %s9, 1
    %p60 = scmp.ne.s32.totalorder %s55, %s57
    %p61 = scmp.eq.s32.totalorder %s9, 0
    %p62 = por %p60, %p61
    %p63 = scmp.ne.s32.totalorder %s55, %s57
    %p64 = scmp.eq.s32.totalorder %s14, 1
    %p65 = por %p63, %p64
    %p66 = scmp.ne.s32.totalorder %s57, %s58
    %p67 = scmp.eq.s32.totalorder %s14, 0
    %p68 = por %p66, %p67
    %p69 = scmp.ne.s32.totalorder %s57, %s58
    %p70 = scmp.eq.s32.totalorder %s15, 1
    %p71 = por %p69, %p70
    %p73 = scmp.ne.s32.totalorder %s58, %s72
    %p74 = scmp.eq.s32.totalorder %s15, 0
    %p75 = por %p73, %p74
    %s77 = sadd.s32 %s76, 1
    %p80 = scmp.eq.s32.totalorder %s9, 1
    %p81 = scmp.ne.s32.totalorder %s76, %s78
    %p82 = scmp.eq.s32.totalorder %s9, 0
    %p83 = por %p81, %p82
    %p84 = scmp.ne.s32.totalorder %s76, %s78
    %p85 = scmp.eq.s32.totalorder %s14, 1
    %p86 = por %p84, %p85
    %p87 = scmp.ne.s32.totalorder %s78, %s79
    %p88 = scmp.eq.s32.totalorder %s14, 0
    %p89 = por %p87, %p88
    %p90 = scmp.ne.s32.totalorder %s78, %s79
    %p91 = scmp.eq.s32.totalorder %s15, 1
    %p92 = por %p90, %p91
    %p94 = scmp.ne.s32.totalorder %s79, %s93
    %p95 = scmp.eq.s32.totalorder %s15, 0
    %p96 = por %p94, %p95
    %s97 = ssub.s32 %s16, %s28
    %s98 = ssub.s32 %s17, %s24
    %s99 = sor.u32 %s97, %s98
    %p100 = scmp.eq.s32.totalorder %s99, 0
    %s102 = sadd.s32 %s101, 1
    %s103 = scalar_select %p100, %s101, %s102
    %p106 = pneg %p100
    %p107 = scmp.eq.s32.totalorder %s9, 1
    %p108 = por %p106, %p107
    %p109 = scmp.ne.s32.totalorder %s101, %s104
    %p110 = scmp.eq.s32.totalorder %s9, 0
    %p111 = por %p109, %p110
    %p112 = scmp.ne.s32.totalorder %s101, %s104
    %p113 = scmp.eq.s32.totalorder %s14, 1
    %p114 = por %p112, %p113
    %p115 = scmp.ne.s32.totalorder %s104, %s105
    %p116 = scmp.eq.s32.totalorder %s14, 0
    %p117 = por %p115, %p116
    %p118 = scmp.ne.s32.totalorder %s104, %s105
    %p119 = scmp.eq.s32.totalorder %s15, 1
    %p120 = por %p118, %p119
    %p122 = scmp.ne.s32.totalorder %s105, %s121
    %p123 = scmp.eq.s32.totalorder %s15, 0
    %p124 = por %p122, %p123
    %p125 = scmp.le.s32.totalorder 1, %s9
    %p126 = scmp.lt.s32.totalorder %s9, 3
    %p127 = pnand %p125, %p126
    %p128 = pneg %p127
    // Predicated region
    $region9: #{adapter_layer.1} parent=5 // pred_check
      _
    $region10: #{adapter_layer.1} parent=5 // pred_check_branch
      %130 = sbr.rel (%p127) target = $region12
    $region11: #{adapter_layer.1} parent=5 // pred_region
      %s131 = ssub.s32 %s9, 1
      // Predicated region
      $region13: #{adapter_layer.1} parent=11 // pred_check
        %p132 = pneg %p68
      $region14: #{adapter_layer.1} parent=11 // pred_check_branch
        %134 = sbr.rel (%p132) target = $region16
      $region15: #{adapter_layer.1} parent=11 // pred_region
        _
      $region16: #{adapter_layer.1} parent=11 // pred_fallthru
        _
      // Predicated region
      $region17: #{adapter_layer.1} parent=11 // pred_check
        %p135 = pneg %p89
      $region18: #{adapter_layer.1} parent=11 // pred_check_branch
        %137 = sbr.rel (%p135) target = $region20
      $region19: #{adapter_layer.1} parent=11 // pred_region
        _
      $region20: #{adapter_layer.1} parent=11 // pred_fallthru
        _
    $region12: #{adapter_layer.1} parent=5 // pred_fallthru
      _
    %p138 = scmp.lt.s32.totalorder %s9, 2
    // Predicated region
    $region21: #{adapter_layer.1} parent=5 // pred_check
      %p139 = pneg %p138
    $region22: #{adapter_layer.1} parent=5 // pred_check_branch
      %141 = sbr.rel (%p139) target = $region24
    $region23: #{adapter_layer.1} parent=5 // pred_region
      // Predicated region
      $region25: #{adapter_layer.1} parent=23 // pred_check
        %p142 = pneg %p41
      $region26: #{adapter_layer.1} parent=23 // pred_check_branch
        %144 = sbr.rel (%p142) target = $region28
      $region27: #{adapter_layer.1} parent=23 // pred_region
        %p145 = scmp.lt.s32.totalorder %s16, 1
        %s146 = scalar_select %p145, %s16, 1
        %s147 = smul.addr %s146, 3
        %s148 = smul.addr %s147, 8
        %s149 = scalar_lea.vmem %s0, %s148
      $region28: #{adapter_layer.1} parent=23 // pred_fallthru
        _
    $region24: #{adapter_layer.1} parent=5 // pred_fallthru
      _
    %p150 = scmp.le.s32.totalorder 1, %s9
    %p151 = scmp.lt.s32.totalorder %s9, 3
    %p152 = pnand %p150, %p151
    %p153 = pneg %p152
    // Predicated region
    $region29: #{adapter_layer.1} parent=5 // pred_check
      _
    $region30: #{adapter_layer.1} parent=5 // pred_check_branch
      %155 = sbr.rel (%p152) target = $region32
    $region31: #{adapter_layer.1} parent=5 // pred_region
      %s156 = ssub.s32 %s9, 1
      %p157 = scmp.lt.s32.totalorder %s18, 1
      %s158 = scalar_select %p157, %s18, 1
      %s159 = smul.addr %s158, 3
      %s160 = smul.addr %s159, 8
      %s161 = scalar_lea.vmem %s0, %s160
      %p162 = pneg %p47
      %p163 = pneg %p44
      %p164 = pneg %p68
      %p165 = pneg %p65
      %p166 = pneg %p89
      %p167 = pneg %p86
      %p168 = pneg %p117
      %p169 = pneg %p114
      %p170 = scmp.lt.s32.totalorder %s18, 1
      %s171 = scalar_select %p170, %s18, 1
      %p172 = scmp.lt.s32.totalorder %s19, 0
      %s173 = scalar_select %p172, %s19, 0
      %s174 = sadd.s32 %s173, %s171
      %s175 = smul.addr %s174, 8
      %s176 = scalar_lea.vmem %s3, %s175
      %p177 = scmp.lt.s32.totalorder %s18, 1
      %s178 = scalar_select %p177, %s18, 1
      %s179 = smul.addr %s178, 3
      %s180 = smul.addr %s179, 8
      %s181 = scalar_lea.vmem %s0, %s180
      %p182 = scmp.lt.s32.totalorder %s18, 1
      %s183 = scalar_select %p182, %s18, 1
      %p184 = scmp.lt.s32.totalorder %s19, 0
      %s185 = scalar_select %p184, %s19, 0
      %s186 = sadd.s32 %s185, %s183
      %s187 = smul.addr %s186, 8
      %s188 = scalar_lea.vmem %s3, %s187
      %s190 = smul.u32 %s19, 16
      %s191 = scalar_lea.vmem %s181, %s190
      %v192 = vld [vmem:[%s191] ss:$2 sm:$0xff]
      %v193 = vpack.c.bf16 %v192, %v192
      %v194 = vld [vmem:[%s1] sm:$0xf]
      %s195 = sadd.s32 %s190, 1
      %s196 = scalar_lea.vmem %s181, %s195
      %v197 = vld [vmem:[%s196] ss:$2 sm:$0xff]
      %v198 = vpack.c.bf16 %v197, %v197
      %s199 = scalar_lea.vmem %s1, 4
      %v200 = vld [vmem:[%s199] sm:$0xf]
      %vm201 = vcmask 64512
      %v203 = vsel %vm201, %v198, 0
      %vm205 = vcmask 1043456
      %v207 = vsel %vm205, %v200, 0
      %209 = vmatpush.bf16.msra.mxu0 0
      %210 = vmatpush.bf16.msra.mxu0 0
      %211 = vmatpush.bf16.msra.mxu0 0
      %212 = vmatpush.bf16.msra.mxu0 0
      %213 = vmatpush.bf16.msra.mxu0 0
      %214 = vmatpush.bf16.msra.mxu0 0
      %215 = vmatpush.bf16.msra.mxu0 0
      %216 = vmatpush.bf16.msra.mxu0 %v207
      %217 = vmatmul.bf16.gmra.mxu0 %v203
      %v218 = vpop.f32.mrf.mxu0
      %v219 = vadd.f32 0.0, %v218
      %v220 = vpop.f32.mrf.mxu0
      %221 = vdwg.mxu0
      %v223 = vsel %vm201, %v193, 0
      %v226 = vsel %vm205, %v194, 0
      %228 = vmatpush.bf16.msra.mxu0 0
      %229 = vmatpush.bf16.msra.mxu0 0
      %230 = vmatpush.bf16.msra.mxu0 0
      %231 = vmatpush.bf16.msra.mxu0 0
      %232 = vmatpush.bf16.msra.mxu0 0
      %233 = vmatpush.bf16.msra.mxu0 0
      %234 = vmatpush.bf16.msra.mxu0 0
      %235 = vmatpush.bf16.msra.mxu0 %v226
      %236 = vmatmul.bf16.gmra.mxu0 %v223
      %v237 = vpop.f32.mrf.mxu0
      %v238 = vadd.f32 %v219, %v237
      %v239 = vpop.f32.mrf.mxu0
      %240 = vdwg.mxu0
      %s241 = sadd.s32 %s190, 2
      %s242 = scalar_lea.vmem %s181, %s241
      %v243 = vld [vmem:[%s242] ss:$2 sm:$0xff]
      %v244 = vpack.c.bf16 %v243, %v243
      %s245 = scalar_lea.vmem %s1, 8
      %v246 = vld [vmem:[%s245] sm:$0xf]
      %v248 = vsel %vm201, %v244, 0
      %v251 = vsel %vm205, %v246, 0
      %253 = vmatpush.bf16.msra.mxu0 0
      %254 = vmatpush.bf16.msra.mxu0 0
      %255 = vmatpush.bf16.msra.mxu0 0
      %256 = vmatpush.bf16.msra.mxu0 0
      %257 = vmatpush.bf16.msra.mxu0 0
      %258 = vmatpush.bf16.msra.mxu0 0
      %259 = vmatpush.bf16.msra.mxu0 0
      %260 = vmatpush.bf16.msra.mxu0 %v251
      %261 = vmatmul.bf16.gmra.mxu0 %v248
      %v262 = vpop.f32.mrf.mxu0
      %v263 = vadd.f32 0.0, %v262
      %v264 = vpop.f32.mrf.mxu0
      %265 = vdwg.mxu0
      %v266 = vadd.f32 %v238, %v263
      %v267 = vld [vmem:[%s2] sm:$0x1]
      %v269 = vperm.slane %v267, 0
      %v271 = vadd.f32 %v266, %v269
      %v272 = vsub.f32 0.0, %v271
      %v273 = vmul.f32 %v272, 1.442695
      %v274 = vpow.pop %v273
      %v275 = vadd.f32 %v274, 1.0
      %v276 = vrcp.pop %v275
      %278 = vrot.lane.b32.xlu0 %v276, 120
      %v279 = vpop.permute.xlu0 %278
      %v281 = vmul.f32 %v271, %v279
      %282 = vst.msk [vmem:[%s188] sm:$0xff] %vm201, %v281
      %p283 = scmp.lt.s32.totalorder %s18, 1
      %s284 = scalar_select %p283, %s18, 1
      %p285 = scmp.lt.s32.totalorder %s19, 0
      %s286 = scalar_select %p285, %s19, 0
      %s287 = sadd.s32 %s286, %s284
      %s288 = smul.addr %s287, 8
      %s289 = scalar_lea.vmem %s3, %s288
      // Predicated region
      $region33: #{adapter_layer.1} parent=31 // pred_check
        %p290 = pneg %p114
      $region34: #{adapter_layer.1} parent=31 // pred_check_branch
        %292 = sbr.rel (%p290) target = $region36
      $region35: #{adapter_layer.1} parent=31 // pred_region
        _
      $region36: #{adapter_layer.1} parent=31 // pred_fallthru
        _
    $region32: #{adapter_layer.1} parent=5 // pred_fallthru
      _
    %p293 = scmp.le.s32.totalorder 2, %s9
    // Predicated region
    $region37: #{adapter_layer.1} parent=5 // pred_check
      %p294 = pneg %p293
    $region38: #{adapter_layer.1} parent=5 // pred_check_branch
      %296 = sbr.rel (%p294) target = $region40
    $region39: #{adapter_layer.1} parent=5 // pred_region
      %s297 = ssub.s32 %s9, 2
      // Predicated region
      $region41: #{adapter_layer.1} parent=39 // pred_check
        %p298 = pneg %p120
      $region42: #{adapter_layer.1} parent=39 // pred_check_branch
        %300 = sbr.rel (%p298) target = $region44
      $region43: #{adapter_layer.1} parent=39 // pred_region
        %p301 = scmp.lt.s32.totalorder %s20, 1
        %s302 = scalar_select %p301, %s20, 1
        %p303 = scmp.lt.s32.totalorder %s21, 0
        %s304 = scalar_select %p303, %s21, 0
        %s305 = sadd.s32 %s304, %s302
        %s306 = smul.addr %s305, 8
        %s307 = scalar_lea.vmem %s3, %s306
      $region44: #{adapter_layer.1} parent=39 // pred_fallthru
        _
    $region40: #{adapter_layer.1} parent=5 // pred_fallthru
      _
  $region6: #{adapter_layer.1} parent=0 // loop_footer
    %s13 = sadd.s32 1, %s9
  $region7: #{adapter_layer.1} parent=0 // loop_footer_branch
    %8 = sbr.rel target = $region3
  $region8: #{adapter_layer.1} parent=0 // loop_exit
    _

</llo_original>
